<compile_context>
chip_gen: v5e
topology: v5e:2x2
jax: 0.10.0
libtpu: 0.0.40
codegen_flags: <defaults>
</compile_context>

<pallas_src>
import math

import jax
import jax.numpy as jnp
from jax.experimental import pallas as pl
from jax.experimental.pallas import tpu as pltpu


# ----------------------------------------------------------------------------- kernel
def agent_kernel(
    obs_ref,               # (B, 1)        int32   discrete observation index
    state_ref,             # (B, 2H)       f32     packed recurrent state [h | c]
    wg_ref,                # (2H, 4*Gp)    bf16    fused gate weights, blocks [i|f|o|g], i/f/o *0.5
    bg_ref,                # (1, 4*Gp)     f32     fused gate bias (same layout/scaling)
    w1_ref, b1_ref,        # (H, 2H) bf16, (1, 2H) f32   fused head layer-1 (policy | value)
    w2_ref, b2_ref,        # (2H, P) bf16, (1, P)  f32   block-diag head layer-2 -> packed output
    out_ref,               # (B, P)        out     [logits(A) | value(1) | zero pad]
    state_out_ref,         # (B, 2H)       out     new packed state [h | c]  (aliased with input)
):
    B, two_h = state_ref.shape
    H = two_h // 2
    Kp = wg_ref.shape[0]            # = 2H (lane-dense gate-matmul K)
    Gp = wg_ref.shape[1] // 4       # per-gate lane block (128)

    state = state_ref[...]          # (B, 2H) f32   [h | c]

    # --- in-register fused operand:  lanes [0,H) = h,  lanes [H,H+n_obs) = onehot(obs), rest 0
    lane = jax.lax.broadcasted_iota(jnp.int32, (B, Kp), 1)
    onehot = (lane == (obs_ref[...] + H)).astype(jnp.float32)       # one-hot shifted by +H
    cat = jnp.where(lane < H, state, onehot)                        # single full-vreg select

    # --- fused encoder + LSTMCell gates: ONE bf16 MXU matmul, f32 accumulate
    wg = wg_ref[...]
    gates = (jnp.dot(cat.astype(wg.dtype), wg, preferred_element_type=jnp.float32)
             + bg_ref[...])                                          # (B, 4*Gp) f32

    # --- single EUP pass:  sigmoid(x) = 0.5*tanh(x/2) + 0.5  (i/f/o pre-scaled by 0.5 offline)
    t = jnp.tanh(gates)
    i_g = 0.5 * t[:, 0 * Gp:0 * Gp + H] + 0.5       # all slices start at lane 0 of a vreg
    f_g = 0.5 * t[:, 1 * Gp:1 * Gp + H] + 0.5
    o_g = 0.5 * t[:, 2 * Gp:2 * Gp + H] + 0.5
    g_g = t[:, 3 * Gp:3 * Gp + H]

    c = state[:, H:]
    c_new = f_g * c + i_g * g_g
    h_new = o_g * jnp.tanh(c_new)
    state_out_ref[...] = jnp.concatenate([h_new, c_new], axis=1)     # lane-dense (B, 2H) store

    # --- fused policy + value heads ---------------------------------------------------------
    w1 = w1_ref[...]
    hid = jnp.tanh(jnp.dot(h_new.astype(w1.dtype), w1,
                           preferred_element_type=jnp.float32) + b1_ref[...])   # (B, 2H)
    w2 = w2_ref[...]
    out_ref[...] = (jnp.dot(hid.astype(w2.dtype), w2,
                            preferred_element_type=jnp.float32) + b2_ref[...])  # (B, P)


# ----------------------------------------------------------------------------- fusing
def prepare_fused_params(params, n_obs, n_actions, weight_dtype=jnp.bfloat16):
    """One-time offline transform of PyTorch-layout params into fused kernel params."""
    H = params["w_hh"].shape[0]
    A = n_actions
    assert n_obs <= H, "TODO(synk): generalize operand packing for n_obs > num_features"
    Kp = 2 * H                               # gate-matmul K == packed state width (lane-dense)
    Gp = ((H + 127) // 128) * 128            # per-gate 128-lane block
    P = ((A + 1 + 127) // 128) * 128         # packed head-output width

    def pad_last(x, width):
        return jnp.pad(x, [(0, 0)] * (x.ndim - 1) + [(0, width - x.shape[-1])])

    def gate_layout(w):
        # (rows, 4H) cols [i|f|g|o]  ->  (rows, 4*Gp) blocks [i|f|o|g], each gate in lanes 0..H-1
        # of its own 128-lane block; i/f/o pre-scaled by 0.5 for the single-tanh sigmoid trick.
        i, f, g, o = jnp.split(w, 4, axis=-1)
        return jnp.concatenate([pad_last(0.5 * i, Gp), pad_last(0.5 * f, Gp),
                                pad_last(0.5 * o, Gp), pad_last(g, Gp)], axis=-1)

    # Fold the embedding table into the input-hidden weights:  emb(obs) @ w_ih == onehot @ (emb @ w_ih)
    w_ih_fused = params["emb_tab"] @ params["w_ih"]                  # (n_obs, 4H)

    # Gate weights; row layout matches the in-kernel operand [h | onehot(obs) | 0]:
    wg = jnp.zeros((Kp, 4 * Gp), jnp.float32)
    wg = wg.at[:H].set(gate_layout(params["w_hh"]))
    wg = wg.at[H:H + n_obs].set(gate_layout(w_ih_fused))
    bg = gate_layout(params["b_lstm"])                               # (1, 4*Gp)  (stays f32)

    # Fused head layer 1 (policy | value): (H, 2H) lane-dense
    w1 = jnp.concatenate([params["wd1"], params["wv1"]], axis=1)
    b1 = jnp.concatenate([params["bd1"], params["bv1"]], axis=1)

    # Block-diagonal head layer 2 -> packed lane-dense output [logits(A) | value | pad]
    w2 = jnp.zeros((2 * H, P), jnp.float32)
    w2 = w2.at[:H, :A].set(params["wd2"])
    w2 = w2.at[H:, A:A + 1].set(params["wv2"])
    b2 = jnp.zeros((1, P), jnp.float32)
    b2 = b2.at[:, :A].set(params["bd2"])
    b2 = b2.at[:, A:A + 1].set(params["bv2"])

    return {"wg": wg.astype(weight_dtype), "bg": bg,
            "w1": w1.astype(weight_dtype), "b1": b1,
            "w2": w2.astype(weight_dtype), "b2": b2,
            "n_obs": n_obs, "n_actions": A, "H": H, "Gp": Gp, "P": P}


# ----------------------------------------------------------------------------- wrapper
def agent_forward(fused, obs, action, state):
    """Equivalent of Agent.forward(obs, action, memory), encoder='discrete', memory=True.

    `state` is the packed recurrent state (B, 2H) = [h | c].  Returns
    (logits, value, new_state); logits represent the Categorical distribution.
    `action` is unused by DiscreteEncoder (kept for API parity).
    """
    del action
    B = state.shape[0]
    H, A, P = fused["H"], fused["n_actions"], fused["P"]

    obs2d = obs.reshape(B, 1).astype(jnp.int32)

    vmem = pl.BlockSpec(memory_space=pltpu.MemorySpace.VMEM)
    out_packed, state_new = pl.pallas_call(
        agent_kernel,
        out_shape=(
            jax.ShapeDtypeStruct((B, P), jnp.float32),       # [logits | value | pad]
            jax.ShapeDtypeStruct((B, 2 * H), jnp.float32),   # new packed [h | c]
        ),
        in_specs=[vmem] * 8,
        out_specs=(vmem, vmem),
        input_output_aliases={1: 1},                         # state updated in place (HBM)
    )(obs2d, state, fused["wg"], fused["bg"], fused["w1"], fused["b1"],
      fused["w2"], fused["b2"])

    logits = out_packed[:, :A]
    value = out_packed[:, A]                                 # torch .squeeze(1)
    return logits, value, state_new


def pack_memory(h, c):
    return jnp.concatenate([h, c], axis=1)


def unpack_memory(state):
    H = state.shape[1] // 2
    return state[:, :H], state[:, H:]


def zero_memory(batch_size, num_features=64):
    return jnp.zeros((batch_size, 2 * num_features), jnp.float32)   # packed [h | c]


# ----------------------------------------------------------------------------- reference
def agent_forward_ref(params, obs, action, memory):
    """Pure-JAX f32 reference (mirrors the PyTorch module) for correctness checking."""
    del action
    h, c = memory
    H = h.shape[1]
    emb = params["emb_tab"][obs]                                           # Embedding
    gates = emb @ params["w_ih"] + h @ params["w_hh"] + params["b_lstm"]   # LSTMCell
    i = jax.nn.sigmoid(gates[:, 0 * H:1 * H])
    f = jax.nn.sigmoid(gates[:, 1 * H:2 * H])
    g = jnp.tanh(gates[:, 2 * H:3 * H])
    o = jax.nn.sigmoid(gates[:, 3 * H:4 * H])
    c_new = f * c + i * g
    h_new = o * jnp.tanh(c_new)
    logits = jnp.tanh(h_new @ params["wd1"] + params["bd1"]) @ params["wd2"] + params["bd2"]
    value = (jnp.tanh(h_new @ params["wv1"] + params["bv1"]) @ params["wv2"] + params["bv2"])[:, 0]
    return logits, value, (h_new, c_new)


# ----------------------------------------------------------------------------- params
def xavier_normal(key, in_dim, out_dim):
    std = math.sqrt(2.0 / (in_dim + out_dim))
    return std * jax.random.normal(key, (in_dim, out_dim), dtype=jnp.float32)


def init_agent_params(key, n_obs, n_actions, num_features=64):
    H = num_features
    ks = jax.random.split(key, 8)
    k_lstm = 1.0 / math.sqrt(H)
    return {
        # DiscreteEncoder: nn.Embedding(n_obs, H)  (default N(0,1) init)
        "emb_tab": jax.random.normal(ks[0], (n_obs, H), dtype=jnp.float32),
        # nn.LSTMCell(H, H): uniform(-1/sqrt(H), 1/sqrt(H)); weights stored transposed
        "w_ih": jax.random.uniform(ks[1], (H, 4 * H), jnp.float32, -k_lstm, k_lstm),
        "w_hh": jax.random.uniform(ks[2], (H, 4 * H), jnp.float32, -k_lstm, k_lstm),
        "b_lstm": jax.random.uniform(ks[3], (1, 4 * H), jnp.float32, -k_lstm, k_lstm),
        # dist head: Linear(H,H), Tanh, Linear(H, n_actions)  (xavier_normal, zero bias)
        "wd1": xavier_normal(ks[4], H, H),
        "bd1": jnp.zeros((1, H), jnp.float32),
        "wd2": xavier_normal(ks[5], H, n_actions),
        "bd2": jnp.zeros((1, n_actions), jnp.float32),
        # value head: Linear(H,H), Tanh, Linear(H, 1)
        "wv1": xavier_normal(ks[6], H, H),
        "bv1": jnp.zeros((1, H), jnp.float32),
        "wv2": xavier_normal(ks[7], H, 1),
        "bv2": jnp.zeros((1, 1), jnp.float32),
    }


# ----------------------------------------------------------------------------- main
if __name__ == "__main__":
    B, H = 8, 64
    N_OBS, N_ACTIONS = 16, 6

    key = jax.random.PRNGKey(0)
    k_params, k_obs, k_act, k_h, k_c = jax.random.split(key, 5)

    params = init_agent_params(k_params, N_OBS, N_ACTIONS, num_features=H)
    fused = prepare_fused_params(params, N_OBS, N_ACTIONS)

    obs = jax.random.randint(k_obs, (B,), 0, N_OBS, dtype=jnp.int32)
    action = jax.random.randint(k_act, (B,), 0, N_ACTIONS, dtype=jnp.int32)
    # non-zero memory so both the h path (matmul) and c path (elementwise) are exercised
    h0 = 0.5 * jax.random.normal(k_h, (B, H), dtype=jnp.float32)
    c0 = 0.5 * jax.random.normal(k_c, (B, H), dtype=jnp.float32)
    state0 = pack_memory(h0, c0)

    logits, value, state1 = agent_forward(fused, obs, action, state0)
    jax.block_until_ready((logits, value, state1))
    h1, c1 = unpack_memory(state1)

    # correctness vs. pure-JAX f32 reference of the original (unfused) module;
    # weights are bf16 in the kernel, so tolerances are relaxed accordingly.
    logits_r, value_r, (h_r, c_r) = agent_forward_ref(params, obs, action, (h0, c0))
    assert logits.shape == (B, N_ACTIONS)
    assert value.shape == (B,)
    assert h1.shape == (B, H) and c1.shape == (B, H)
    assert jnp.allclose(logits, logits_r, rtol=2e-2, atol=2e-2)
    assert jnp.allclose(value, value_r, rtol=2e-2, atol=2e-2)
    assert jnp.allclose(h1, h_r, rtol=2e-2, atol=2e-2)
    assert jnp.allclose(c1, c_r, rtol=2e-2, atol=2e-2)
    assert bool(jnp.all(jnp.isfinite(logits))) and bool(jnp.all(jnp.isfinite(value)))
    print("KERNEL_OK")
</pallas_src>

<mosaic_0001>
module attributes {stable_mosaic.version = 11 : i64} {
  func.func @agent_kernel(%arg0: memref<8x1xi32, #tpu.memory_space<vmem>>, %arg1: memref<8x128xf32, #tpu.memory_space<vmem>>, %arg2: memref<128x512xbf16, #tpu.memory_space<vmem>>, %arg3: memref<1x512xf32, #tpu.memory_space<vmem>>, %arg4: memref<64x128xbf16, #tpu.memory_space<vmem>>, %arg5: memref<1x128xf32, #tpu.memory_space<vmem>>, %arg6: memref<128x128xbf16, #tpu.memory_space<vmem>>, %arg7: memref<1x128xf32, #tpu.memory_space<vmem>>, %arg8: memref<8x128xf32, #tpu.memory_space<vmem>>, %arg9: memref<8x128xf32, #tpu.memory_space<vmem>>) attributes {dimension_semantics = [], scalar_prefetch = 0 : i64, scratch_operands = 0 : i64, tpu.core_type = #tpu.core_type<tc>} {
    %c0 = arith.constant 0 : index
    %c0_0 = arith.constant 0 : index
    %0 = vector.load %arg1[%c0, %c0_0] : memref<8x128xf32, #tpu.memory_space<vmem>>, vector<8x128xf32>
    %1 = tpu.iota {dimensions = array<i32: 1>} : vector<8x128xi32>
    %c0_1 = arith.constant 0 : index
    %c0_2 = arith.constant 0 : index
    %2 = vector.load %arg0[%c0_1, %c0_2] : memref<8x1xi32, #tpu.memory_space<vmem>>, vector<8x1xi32>
    %c64_i32 = arith.constant 64 : i32
    %3 = vector.broadcast %c64_i32 : i32 to vector<8x1xi32>
    %4 = arith.addi %2, %3 : vector<8x1xi32>
    %5 = vector.broadcast %4 : vector<8x1xi32> to vector<8x128xi32>
    %6 = arith.cmpi eq, %1, %5 : vector<8x128xi32>
    %7 = arith.extui %6 : vector<8x128xi1> to vector<8x128xi32>
    %8 = arith.sitofp %7 : vector<8x128xi32> to vector<8x128xf32>
    %c64_i32_3 = arith.constant 64 : i32
    %9 = vector.broadcast %c64_i32_3 : i32 to vector<8x128xi32>
    %10 = arith.cmpi slt, %1, %9 : vector<8x128xi32>
    %11 = arith.select %10, %0, %8 : vector<8x128xi1>, vector<8x128xf32>
    %c0_4 = arith.constant 0 : index
    %c0_5 = arith.constant 0 : index
    %12 = vector.load %arg2[%c0_4, %c0_5] : memref<128x512xbf16, #tpu.memory_space<vmem>>, vector<128x512xbf16>
    %13 = arith.truncf %11 : vector<8x128xf32> to vector<8x128xbf16>
    %cst = arith.constant dense<0.000000e+00> : vector<8x512xf32>
    %14 = tpu.matmul %13, %12, %cst {dimension_numbers = #tpu.dot_dimension_numbers<[1], [0], [0], [1], [0, 0, 1, 1], [], []>} : vector<8x128xbf16>, vector<128x512xbf16>, vector<8x512xf32> -> vector<8x512xf32>
    %c0_6 = arith.constant 0 : index
    %c0_7 = arith.constant 0 : index
    %15 = vector.load %arg3[%c0_6, %c0_7] : memref<1x512xf32, #tpu.memory_space<vmem>>, vector<1x512xf32>
    %16 = vector.broadcast %15 : vector<1x512xf32> to vector<8x512xf32>
    %17 = arith.addf %14, %16 : vector<8x512xf32>
    %18 = math.tanh %17 : vector<8x512xf32>
    %19 = vector.extract_strided_slice %18 {offsets = [0, 0], sizes = [8, 64], strides = [1, 1]} : vector<8x512xf32> to vector<8x64xf32>
    %cst_8 = arith.constant 5.000000e-01 : f32
    %20 = vector.broadcast %cst_8 : f32 to vector<8x64xf32>
    %21 = arith.mulf %20, %19 : vector<8x64xf32>
    %cst_9 = arith.constant 5.000000e-01 : f32
    %22 = vector.broadcast %cst_9 : f32 to vector<8x64xf32>
    %23 = arith.addf %21, %22 : vector<8x64xf32>
    %24 = vector.extract_strided_slice %18 {offsets = [0, 128], sizes = [8, 64], strides = [1, 1]} : vector<8x512xf32> to vector<8x64xf32>
    %cst_10 = arith.constant 5.000000e-01 : f32
    %25 = vector.broadcast %cst_10 : f32 to vector<8x64xf32>
    %26 = arith.mulf %25, %24 : vector<8x64xf32>
    %cst_11 = arith.constant 5.000000e-01 : f32
    %27 = vector.broadcast %cst_11 : f32 to vector<8x64xf32>
    %28 = arith.addf %26, %27 : vector<8x64xf32>
    %29 = vector.extract_strided_slice %18 {offsets = [0, 256], sizes = [8, 64], strides = [1, 1]} : vector<8x512xf32> to vector<8x64xf32>
    %cst_12 = arith.constant 5.000000e-01 : f32
    %30 = vector.broadcast %cst_12 : f32 to vector<8x64xf32>
    %31 = arith.mulf %30, %29 : vector<8x64xf32>
    %cst_13 = arith.constant 5.000000e-01 : f32
    %32 = vector.broadcast %cst_13 : f32 to vector<8x64xf32>
    %33 = arith.addf %31, %32 : vector<8x64xf32>
    %34 = vector.extract_strided_slice %18 {offsets = [0, 384], sizes = [8, 64], strides = [1, 1]} : vector<8x512xf32> to vector<8x64xf32>
    %35 = vector.extract_strided_slice %0 {offsets = [0, 64], sizes = [8, 64], strides = [1, 1]} : vector<8x128xf32> to vector<8x64xf32>
    %36 = arith.mulf %28, %35 : vector<8x64xf32>
    %37 = arith.mulf %23, %34 : vector<8x64xf32>
    %38 = arith.addf %36, %37 : vector<8x64xf32>
    %39 = math.tanh %38 : vector<8x64xf32>
    %40 = arith.mulf %33, %39 : vector<8x64xf32>
    %41 = tpu.concatenate %40, %38 in 1 : vector<8x64xf32>, vector<8x64xf32> -> vector<8x128xf32>
    %c0_14 = arith.constant 0 : index
    %c0_15 = arith.constant 0 : index
    %42 = vector.load %arg9[%c0_14, %c0_15] : memref<8x128xf32, #tpu.memory_space<vmem>>, vector<8x128xf32>
    tpu.vector_store %arg9[%c0_14, %c0_15], %41 {strides = array<i32>} : memref<8x128xf32, #tpu.memory_space<vmem>>, vector<8x128xf32>,
    %c0_16 = arith.constant 0 : index
    %c0_17 = arith.constant 0 : index
    %43 = vector.load %arg4[%c0_16, %c0_17] : memref<64x128xbf16, #tpu.memory_space<vmem>>, vector<64x128xbf16>
    %44 = arith.truncf %40 : vector<8x64xf32> to vector<8x64xbf16>
    %cst_18 = arith.constant dense<0.000000e+00> : vector<8x128xf32>
    %45 = tpu.matmul %44, %43, %cst_18 {dimension_numbers = #tpu.dot_dimension_numbers<[1], [0], [0], [1], [0, 0, 1, 1], [], []>} : vector<8x64xbf16>, vector<64x128xbf16>, vector<8x128xf32> -> vector<8x128xf32>
    %c0_19 = arith.constant 0 : index
    %c0_20 = arith.constant 0 : index
    %46 = vector.load %arg5[%c0_19, %c0_20] : memref<1x128xf32, #tpu.memory_space<vmem>>, vector<1x128xf32>
    %47 = vector.broadcast %46 : vector<1x128xf32> to vector<8x128xf32>
    %48 = arith.addf %45, %47 : vector<8x128xf32>
    %49 = math.tanh %48 : vector<8x128xf32>
    %c0_21 = arith.constant 0 : index
    %c0_22 = arith.constant 0 : index
    %50 = vector.load %arg6[%c0_21, %c0_22] : memref<128x128xbf16, #tpu.memory_space<vmem>>, vector<128x128xbf16>
    %51 = arith.truncf %49 : vector<8x128xf32> to vector<8x128xbf16>
    %cst_23 = arith.constant dense<0.000000e+00> : vector<8x128xf32>
    %52 = tpu.matmul %51, %50, %cst_23 {dimension_numbers = #tpu.dot_dimension_numbers<[1], [0], [0], [1], [0, 0, 1, 1], [], []>} : vector<8x128xbf16>, vector<128x128xbf16>, vector<8x128xf32> -> vector<8x128xf32>
    %c0_24 = arith.constant 0 : index
    %c0_25 = arith.constant 0 : index
    %53 = vector.load %arg7[%c0_24, %c0_25] : memref<1x128xf32, #tpu.memory_space<vmem>>, vector<1x128xf32>
    %54 = vector.broadcast %53 : vector<1x128xf32> to vector<8x128xf32>
    %55 = arith.addf %52, %54 : vector<8x128xf32>
    %c0_26 = arith.constant 0 : index
    %c0_27 = arith.constant 0 : index
    %56 = vector.load %arg8[%c0_26, %c0_27] : memref<8x128xf32, #tpu.memory_space<vmem>>, vector<8x128xf32>
    tpu.vector_store %arg8[%c0_26, %c0_27], %55 {strides = array<i32>} : memref<8x128xf32, #tpu.memory_space<vmem>>, vector<8x128xf32>,
    return
  }
}

</mosaic_0001>

<llo_original>
// kernel: tpu_custom_call.1
$region0: #{tpu_custom_call.1}
  #allocation0 [shape = 'u32[]', space=smem, size = 0x4, offset = 0x4, fixed_abs, tag = 'smem constant byte address 0x4 - core index']
  #allocation1 [shape = 'u32[72,128]{1,0:T(1,128)}', space=vmem, size = 0x9000, scoped, tag = 'internal scratch']
  %s0 = inlined_call_operand.vmem [shape: s32[8,1], index: 0, kind: input, shape index: {}]
  %s1 = inlined_call_operand.hbm [shape: f32[8,128], index: 1, kind: input, shape index: {}, may-alias: {1,9}]
  %s2 = inlined_call_operand.hbm [shape: bf16[128,512], index: 2, kind: input, shape index: {}]
  %s3 = inlined_call_operand.vmem [shape: f32[1,512], index: 3, kind: input, shape index: {}]
  %s4 = inlined_call_operand.hbm [shape: bf16[64,128], index: 4, kind: input, shape index: {}]
  %s5 = inlined_call_operand.vmem [shape: f32[1,128], index: 5, kind: input, shape index: {}]
  %s6 = inlined_call_operand.hbm [shape: bf16[128,128], index: 6, kind: input, shape index: {}]
  %s7 = inlined_call_operand.vmem [shape: f32[1,128], index: 7, kind: input, shape index: {}]
  %s8 = inlined_call_operand.hbm [shape: f32[8,128], index: 8, kind: output, shape index: {0}]
  %s9 = inlined_call_operand.hbm [shape: f32[8,128], index: 9, kind: output, shape index: {1}, may-alias: {1,9}]
  %10 = xla_tuple %s8, %s9
  %s11 = sld [smem:[#allocation0]]
  $region66: #{tpu_custom_call.1} parent=0
    _
  %s13 = ssub.s32 1, %s11
  %s14 = scalar_select 0, %s13, %s11
  $region1: #{tpu_custom_call.1} parent=0
    #allocation2 [shape = 'u8[4096]{0}', space=vmem, size = 0x1000, scoped, tag = 'input window, operand 1, single buffered']
    #allocation3 [shape = 's32[1]{0}', space=sflag, size = 0x4, scoped, tag = 'scoped memory for tpu_custom_call.1']
    #allocation4 [shape = 's32[1]{0}', space=sflag, size = 0x4, scoped, tag = 'scoped memory for tpu_custom_call.1']
    #allocation5 [shape = 'u8[131072]{0}', space=vmem, size = 0x20000, scoped, tag = 'input window, operand 2, single buffered']
    #allocation6 [shape = 's32[1]{0}', space=sflag, size = 0x4, scoped, tag = 'scoped memory for tpu_custom_call.1']
    #allocation7 [shape = 'u8[16384]{0}', space=vmem, size = 0x4000, scoped, tag = 'input window, operand 4, single buffered']
    #allocation8 [shape = 'u8[32768]{0}', space=vmem, size = 0x8000, scoped, tag = 'input window, operand 6, single buffered']
    #allocation9 [shape = 's32[1]{0}', space=sflag, size = 0x4, scoped, tag = 'scoped memory for tpu_custom_call.1']
    #allocation10 [shape = 'u8[4096]{0}', space=vmem, size = 0x1000, scoped, tag = 'output window, operand 0, single buffered']
    #allocation11 [shape = 'u8[4096]{0}', space=vmem, size = 0x1000, scoped, tag = 'output window, operand 1, single buffered']
    #allocation12 [shape = 's32[1]{0}', space=sflag, size = 0x4, scoped, tag = 'scoped memory for tpu_custom_call.1']
    %15 = vsyncpa [#allocation3], 0
    %16 = vsyncpa [#allocation6], 0
    %17 = vsyncpa [#allocation9], 0
    %18 = vsyncpa [#allocation4], 0
    %19 = vsyncpa [#allocation12], 0
    // Predicated region
    $region2: #{tpu_custom_call.1} parent=1 // pred_check
      _
    $region3: #{tpu_custom_call.1} parent=1 // pred_check_branch
      %21 = sbr.rel (0) target = $region5
    $region4: #{tpu_custom_call.1} parent=1 // pred_region
      _
    $region5: #{tpu_custom_call.1} parent=1 // pred_fallthru
      _
    // Predicated region
    $region6: #{tpu_custom_call.1} parent=1 // pred_check
      _
    $region7: #{tpu_custom_call.1} parent=1 // pred_check_branch
      %23 = sbr.rel (0) target = $region9
    $region8: #{tpu_custom_call.1} parent=1 // pred_region
      %25 = vsyncadd [#allocation3], 0
      %s27 = sshll.u32 %s1, 4
      %s28 = int_to_ptr.hbm [resolvable:$true] %s27
      %s29 = sshll.u32 [#allocation2], 4
      %s30 = int_to_ptr.vmem [resolvable:$true] %s29
      %32 = dma.hbm_to_vmem [thread:$0]  %s28, 128, %s30, [#allocation3]
    $region9: #{tpu_custom_call.1} parent=1 // pred_fallthru
      _
    // Predicated region
    $region10: #{tpu_custom_call.1} parent=1 // pred_check
      _
    $region11: #{tpu_custom_call.1} parent=1 // pred_check_branch
      %34 = sbr.rel (0) target = $region13
    $region12: #{tpu_custom_call.1} parent=1 // pred_region
      %36 = vsyncadd [#allocation6], 0
      %s37 = sshll.u32 %s2, 4
      %s38 = int_to_ptr.hbm [resolvable:$true] %s37
      %s39 = sshll.u32 [#allocation5], 4
      %s40 = int_to_ptr.vmem [resolvable:$true] %s39
      %45 = dma.hbm_to_vmem [thread:$0]  %s38, 4096, %s40, [#allocation6], 256, 256, 16
    $region13: #{tpu_custom_call.1} parent=1 // pred_fallthru
      _
    // Predicated region
    $region14: #{tpu_custom_call.1} parent=1 // pred_check
      _
    $region15: #{tpu_custom_call.1} parent=1 // pred_check_branch
      %47 = sbr.rel (0) target = $region17
    $region16: #{tpu_custom_call.1} parent=1 // pred_region
      _
    $region17: #{tpu_custom_call.1} parent=1 // pred_fallthru
      _
    // Predicated region
    $region18: #{tpu_custom_call.1} parent=1 // pred_check
      _
    $region19: #{tpu_custom_call.1} parent=1 // pred_check_branch
      %49 = sbr.rel (0) target = $region21
    $region20: #{tpu_custom_call.1} parent=1 // pred_region
      %51 = vsyncadd [#allocation6], 0
      %s52 = sshll.u32 %s4, 4
      %s53 = int_to_ptr.hbm [resolvable:$true] %s52
      %s54 = sshll.u32 [#allocation7], 4
      %s55 = int_to_ptr.vmem [resolvable:$true] %s54
      %60 = dma.hbm_to_vmem [thread:$0]  %s53, 512, %s55, [#allocation6], 64, 64, 4
    $region21: #{tpu_custom_call.1} parent=1 // pred_fallthru
      _
    // Predicated region
    $region22: #{tpu_custom_call.1} parent=1 // pred_check
      _
    $region23: #{tpu_custom_call.1} parent=1 // pred_check_branch
      %62 = sbr.rel (0) target = $region25
    $region24: #{tpu_custom_call.1} parent=1 // pred_region
      _
    $region25: #{tpu_custom_call.1} parent=1 // pred_fallthru
      _
    // Predicated region
    $region26: #{tpu_custom_call.1} parent=1 // pred_check
      _
    $region27: #{tpu_custom_call.1} parent=1 // pred_check_branch
      %64 = sbr.rel (0) target = $region29
    $region28: #{tpu_custom_call.1} parent=1 // pred_region
      %66 = vsyncadd [#allocation9], 0
      %s67 = sshll.u32 %s6, 4
      %s68 = int_to_ptr.hbm [resolvable:$true] %s67
      %s69 = sshll.u32 [#allocation8], 4
      %s70 = int_to_ptr.vmem [resolvable:$true] %s69
      %75 = dma.hbm_to_vmem [thread:$0]  %s68, 1024, %s70, [#allocation9], 64, 64, 4
    $region29: #{tpu_custom_call.1} parent=1 // pred_fallthru
      _
    // Predicated region
    $region30: #{tpu_custom_call.1} parent=1 // pred_check
      _
    $region31: #{tpu_custom_call.1} parent=1 // pred_check_branch
      %77 = sbr.rel (0) target = $region33
    $region32: #{tpu_custom_call.1} parent=1 // pred_region
      _
    $region33: #{tpu_custom_call.1} parent=1 // pred_fallthru
      _
    // Predicated region
    $region34: #{tpu_custom_call.1} parent=1 // pred_check
      _
    $region35: #{tpu_custom_call.1} parent=1 // pred_check_branch
      %79 = sbr.rel (0) target = $region37
    $region36: #{tpu_custom_call.1} parent=1 // pred_region
      %81 = dma.done [#allocation3], 128
    $region37: #{tpu_custom_call.1} parent=1 // pred_fallthru
      _
    // Predicated region
    $region38: #{tpu_custom_call.1} parent=1 // pred_check
      _
    $region39: #{tpu_custom_call.1} parent=1 // pred_check_branch
      %83 = sbr.rel (0) target = $region41
    $region40: #{tpu_custom_call.1} parent=1 // pred_region
      %85 = dma.done [#allocation6], 4096
    $region41: #{tpu_custom_call.1} parent=1 // pred_fallthru
      _
    // Predicated region
    $region42: #{tpu_custom_call.1} parent=1 // pred_check
      _
    $region43: #{tpu_custom_call.1} parent=1 // pred_check_branch
      %87 = sbr.rel (0) target = $region45
    $region44: #{tpu_custom_call.1} parent=1 // pred_region
      %89 = dma.done [#allocation6], 512
    $region45: #{tpu_custom_call.1} parent=1 // pred_fallthru
      _
    // Predicated region
    $region46: #{tpu_custom_call.1} parent=1 // pred_check
      _
    $region47: #{tpu_custom_call.1} parent=1 // pred_check_branch
      %91 = sbr.rel (0) target = $region49
    $region48: #{tpu_custom_call.1} parent=1 // pred_region
      %93 = dma.done [#allocation9], 1024
    $region49: #{tpu_custom_call.1} parent=1 // pred_fallthru
      _
    %v95 = vld [vmem:[#allocation2] sm:$0xff]
    %v96 = vlaneseq
    %v97 = vand.u32 %v96, 127
    %v98 = vld [vmem:[%s0] sm:$0xff]
    %v99 = vadd.s32 %v98, 64
    %100 = vset.pattern.permute.xlu0 0
    %101 = vperm.xlu0 %100, %v99
    %v102 = vpop.permute.xlu0 %101
    %vm103 = vcmp.eq.s32.totalorder %v97, %v102
    %v104 = vsel %vm103, 1, 0
    %v105 = vcvt.s32.f32 %v104
    %vm106 = vcmp.lt.s32.totalorder %v97, 64
    %v107 = vsel %vm106, %v95, %v105
    %v108 = vld [vmem:[#allocation5] sm:$0xff]
    %v109 = vld [vmem:[#allocation5 + $0x8] sm:$0xff]
    %v110 = vld [vmem:[#allocation5 + $0x10] sm:$0xff]
    %v111 = vld [vmem:[#allocation5 + $0x18] sm:$0xff]
    %v112 = vld [vmem:[#allocation5 + $0x20] sm:$0xff]
    %v113 = vld [vmem:[#allocation5 + $0x28] sm:$0xff]
    %v114 = vld [vmem:[#allocation5 + $0x30] sm:$0xff]
    %v115 = vld [vmem:[#allocation5 + $0x38] sm:$0xff]
    %v116 = vld [vmem:[#allocation5 + $0x40] sm:$0xff]
    %v117 = vld [vmem:[#allocation5 + $0x48] sm:$0xff]
    %v118 = vld [vmem:[#allocation5 + $0x50] sm:$0xff]
    %v119 = vld [vmem:[#allocation5 + $0x58] sm:$0xff]
    %v120 = vld [vmem:[#allocation5 + $0x60] sm:$0xff]
    %v121 = vld [vmem:[#allocation5 + $0x68] sm:$0xff]
    %v122 = vld [vmem:[#allocation5 + $0x70] sm:$0xff]
    %v123 = vld [vmem:[#allocation5 + $0x78] sm:$0xff]
    %v124 = vld [vmem:[#allocation5 + $0x80] sm:$0xff]
    %v125 = vld [vmem:[#allocation5 + $0x88] sm:$0xff]
    %v126 = vld [vmem:[#allocation5 + $0x90] sm:$0xff]
    %v127 = vld [vmem:[#allocation5 + $0x98] sm:$0xff]
    %v128 = vld [vmem:[#allocation5 + $0xa0] sm:$0xff]
    %v129 = vld [vmem:[#allocation5 + $0xa8] sm:$0xff]
    %v130 = vld [vmem:[#allocation5 + $0xb0] sm:$0xff]
    %v131 = vld [vmem:[#allocation5 + $0xb8] sm:$0xff]
    %v132 = vld [vmem:[#allocation5 + $0xc0] sm:$0xff]
    %v133 = vld [vmem:[#allocation5 + $0xc8] sm:$0xff]
    %v134 = vld [vmem:[#allocation5 + $0xd0] sm:$0xff]
    %v135 = vld [vmem:[#allocation5 + $0xd8] sm:$0xff]
    %v136 = vld [vmem:[#allocation5 + $0xe0] sm:$0xff]
    %v137 = vld [vmem:[#allocation5 + $0xe8] sm:$0xff]
    %v138 = vld [vmem:[#allocation5 + $0xf0] sm:$0xff]
    %v139 = vld [vmem:[#allocation5 + $0xf8] sm:$0xff]
    %v140 = vpack.c.bf16 %v107, %v107
    %v141 = vld [vmem:[%s3] sm:$0xf]
    %v143 = vperm.slane %v141, 0
    %v144 = vperm.slane %v141, 1
    %v145 = vperm.slane %v141, 2
    %v146 = vperm.slane %v141, 3
    %v183 = vunpack.c.l.b16 %v108
    %v184 = vunpack.c.h.b16 %v108
    %v185 = vunpack.c.l.b16 %v109
    %v186 = vunpack.c.h.b16 %v109
    %v187 = vunpack.c.l.b16 %v110
    %v188 = vunpack.c.h.b16 %v110
    %v189 = vunpack.c.l.b16 %v111
    %v190 = vunpack.c.h.b16 %v111
    %v191 = vunpack.c.l.b16 %v112
    %v192 = vunpack.c.h.b16 %v112
    %v193 = vunpack.c.l.b16 %v113
    %v194 = vunpack.c.h.b16 %v113
    %v195 = vunpack.c.l.b16 %v114
    %v196 = vunpack.c.h.b16 %v114
    %v197 = vunpack.c.l.b16 %v115
    %v198 = vunpack.c.h.b16 %v115
    %v199 = vunpack.c.l.b16 %v116
    %v200 = vunpack.c.h.b16 %v116
    %v201 = vunpack.c.l.b16 %v117
    %v202 = vunpack.c.h.b16 %v117
    %v203 = vunpack.c.l.b16 %v118
    %v204 = vunpack.c.h.b16 %v118
    %v205 = vunpack.c.l.b16 %v119
    %v206 = vunpack.c.h.b16 %v119
    %v207 = vunpack.c.l.b16 %v120
    %v208 = vunpack.c.h.b16 %v120
    %v209 = vunpack.c.l.b16 %v121
    %v210 = vunpack.c.h.b16 %v121
    %v211 = vunpack.c.l.b16 %v122
    %v212 = vunpack.c.h.b16 %v122
    %v213 = vunpack.c.l.b16 %v123
    %v214 = vunpack.c.h.b16 %v123
    %v215 = vunpack.c.l.b16 %v124
    %v216 = vunpack.c.h.b16 %v124
    %v217 = vunpack.c.l.b16 %v125
    %v218 = vunpack.c.h.b16 %v125
    %v219 = vunpack.c.l.b16 %v126
    %v220 = vunpack.c.h.b16 %v126
    %v221 = vunpack.c.l.b16 %v127
    %v222 = vunpack.c.h.b16 %v127
    %v223 = vunpack.c.l.b16 %v128
    %v224 = vunpack.c.h.b16 %v128
    %v225 = vunpack.c.l.b16 %v129
    %v226 = vunpack.c.h.b16 %v129
    %v227 = vunpack.c.l.b16 %v130
    %v228 = vunpack.c.h.b16 %v130
    %v229 = vunpack.c.l.b16 %v131
    %v230 = vunpack.c.h.b16 %v131
    %v231 = vunpack.c.l.b16 %v132
    %v232 = vunpack.c.h.b16 %v132
    %v233 = vunpack.c.l.b16 %v133
    %v234 = vunpack.c.h.b16 %v133
    %v235 = vunpack.c.l.b16 %v134
    %v236 = vunpack.c.h.b16 %v134
    %v237 = vunpack.c.l.b16 %v135
    %v238 = vunpack.c.h.b16 %v135
    %v239 = vunpack.c.l.b16 %v136
    %v240 = vunpack.c.h.b16 %v136
    %v241 = vunpack.c.l.b16 %v137
    %v242 = vunpack.c.h.b16 %v137
    %v243 = vunpack.c.l.b16 %v138
    %v244 = vunpack.c.h.b16 %v138
    %v245 = vunpack.c.l.b16 %v139
    %v246 = vunpack.c.h.b16 %v139
    %v247 = vpack.c.b16 %v187, %v183
    %v248 = vpack.c.b16 %v188, %v184
    %v249 = vpack.c.b16 %v189, %v185
    %v250 = vpack.c.b16 %v190, %v186
    %v251 = vpack.c.b16 %v195, %v191
    %v252 = vpack.c.b16 %v196, %v192
    %v253 = vpack.c.b16 %v197, %v193
    %v254 = vpack.c.b16 %v198, %v194
    %v255 = vpack.c.b16 %v203, %v199
    %v256 = vpack.c.b16 %v204, %v200
    %v257 = vpack.c.b16 %v205, %v201
    %v258 = vpack.c.b16 %v206, %v202
    %v259 = vpack.c.b16 %v211, %v207
    %v260 = vpack.c.b16 %v212, %v208
    %v261 = vpack.c.b16 %v213, %v209
    %v262 = vpack.c.b16 %v214, %v210
    %v263 = vpack.c.b16 %v219, %v215
    %v264 = vpack.c.b16 %v220, %v216
    %v265 = vpack.c.b16 %v221, %v217
    %v266 = vpack.c.b16 %v222, %v218
    %v267 = vpack.c.b16 %v227, %v223
    %v268 = vpack.c.b16 %v228, %v224
    %v269 = vpack.c.b16 %v229, %v225
    %v270 = vpack.c.b16 %v230, %v226
    %v271 = vpack.c.b16 %v235, %v231
    %v272 = vpack.c.b16 %v236, %v232
    %v273 = vpack.c.b16 %v237, %v233
    %v274 = vpack.c.b16 %v238, %v234
    %v275 = vpack.c.b16 %v243, %v239
    %v276 = vpack.c.b16 %v244, %v240
    %v277 = vpack.c.b16 %v245, %v241
    %v278 = vpack.c.b16 %v246, %v242
    %311 = vmatpush.bf16.msra.mxu0 %v275
    %312 = vmatpush.bf16.msra.mxu0 %v271
    %313 = vmatpush.bf16.msra.mxu0 %v267
    %314 = vmatpush.bf16.msra.mxu0 %v263
    %315 = vmatpush.bf16.msra.mxu0 %v259
    %316 = vmatpush.bf16.msra.mxu0 %v255
    %317 = vmatpush.bf16.msra.mxu0 %v251
    %318 = vmatpush.bf16.msra.mxu0 %v247
    %319 = vmatmul.bf16.gmra.mxu0 %v140
    %v320 = vpop.f32.mrf.mxu0
    %v321 = vadd.f32 %v143, %v320
    %v322 = vpop.f32.mrf.mxu0
    %323 = vdwg.mxu0
    %324 = vmatpush.bf16.msra.mxu0 %v276
    %325 = vmatpush.bf16.msra.mxu0 %v272
    %326 = vmatpush.bf16.msra.mxu0 %v268
    %327 = vmatpush.bf16.msra.mxu0 %v264
    %328 = vmatpush.bf16.msra.mxu0 %v260
    %329 = vmatpush.bf16.msra.mxu0 %v256
    %330 = vmatpush.bf16.msra.mxu0 %v252
    %331 = vmatpush.bf16.msra.mxu0 %v248
    %332 = vmatmul.bf16.gmra.mxu0 %v140
    %v333 = vpop.f32.mrf.mxu0
    %v334 = vadd.f32 %v144, %v333
    %v335 = vpop.f32.mrf.mxu0
    %336 = vdwg.mxu0
    %337 = vmatpush.bf16.msra.mxu0 %v277
    %338 = vmatpush.bf16.msra.mxu0 %v273
    %339 = vmatpush.bf16.msra.mxu0 %v269
    %340 = vmatpush.bf16.msra.mxu0 %v265
    %341 = vmatpush.bf16.msra.mxu0 %v261
    %342 = vmatpush.bf16.msra.mxu0 %v257
    %343 = vmatpush.bf16.msra.mxu0 %v253
    %344 = vmatpush.bf16.msra.mxu0 %v249
    %345 = vmatmul.bf16.gmra.mxu0 %v140
    %v346 = vpop.f32.mrf.mxu0
    %v347 = vadd.f32 %v145, %v346
    %v348 = vpop.f32.mrf.mxu0
    %349 = vdwg.mxu0
    %350 = vmatpush.bf16.msra.mxu0 %v278
    %351 = vmatpush.bf16.msra.mxu0 %v274
    %352 = vmatpush.bf16.msra.mxu0 %v270
    %353 = vmatpush.bf16.msra.mxu0 %v266
    %354 = vmatpush.bf16.msra.mxu0 %v262
    %355 = vmatpush.bf16.msra.mxu0 %v258
    %356 = vmatpush.bf16.msra.mxu0 %v254
    %357 = vmatpush.bf16.msra.mxu0 %v250
    %358 = vmatmul.bf16.gmra.mxu0 %v140
    %v359 = vpop.f32.mrf.mxu0
    %v360 = vadd.f32 %v146, %v359
    %v361 = vpop.f32.mrf.mxu0
    %362 = vdwg.mxu0
    %v363 = vtanh.pop %v321
    %v364 = vtanh.pop %v334
    %v365 = vtanh.pop %v347
    %v366 = vtanh.pop %v360
    %v367 = vmul.f32 %v363, 0.5
    %v368 = vadd.f32 %v367, 0.5
    %v369 = vmul.f32 %v364, 0.5
    %v370 = vadd.f32 %v369, 0.5
    %v371 = vmul.f32 %v365, 0.5
    %v372 = vadd.f32 %v371, 0.5
    %374 = vrot.lane.b32.xlu0 %v95, 64
    %v375 = vpop.permute.xlu0 %374
    %v377 = vmul.f32 %v370, %v375
    %v378 = vmul.f32 %v368, %v366
    %v379 = vadd.f32 %v377, %v378
    %v380 = vtanh.pop %v379
    %v381 = vmul.f32 %v372, %v380
    %383 = vrot.lane.b32.xlu0 %v379, 64
    %v384 = vpop.permute.xlu0 %383
    %vm386 = vcmask 523264
    %v387 = vsel %vm386, %v381, %v384
    %388 = vst [vmem:[#allocation11] sm:$0xff] %v387
    %v389 = vld [vmem:[#allocation7] sm:$0xf]
    %v390 = vld [vmem:[#allocation7 + $0x4] sm:$0xf]
    %v391 = vld [vmem:[#allocation7 + $0x8] sm:$0xf]
    %v392 = vld [vmem:[#allocation7 + $0xc] sm:$0xf]
    %v393 = vld [vmem:[#allocation7 + $0x10] sm:$0xf]
    %v394 = vld [vmem:[#allocation7 + $0x14] sm:$0xf]
    %v395 = vld [vmem:[#allocation7 + $0x18] sm:$0xf]
    %v396 = vld [vmem:[#allocation7 + $0x1c] sm:$0xf]
    %v397 = vpack.c.bf16 %v381, %v381
    %v398 = vld [vmem:[%s5] sm:$0x1]
    %v400 = vperm.slane %v398, 0
    %v410 = vunpack.c.l.b16 %v389
    %v411 = vunpack.c.l.b16 %v390
    %v412 = vunpack.c.l.b16 %v391
    %v413 = vunpack.c.l.b16 %v392
    %v414 = vunpack.c.l.b16 %v393
    %v415 = vunpack.c.l.b16 %v394
    %v416 = vunpack.c.l.b16 %v395
    %v417 = vunpack.c.l.b16 %v396
    %v418 = vpack.c.b16 %v411, %v410
    %v419 = vpack.c.b16 %v413, %v412
    %v420 = vpack.c.b16 %v415, %v414
    %v421 = vpack.c.b16 %v417, %v416
    %v427 = vsel %vm386, %v397, 0
    %429 = vmatpush.bf16.msra.mxu0 0
    %430 = vmatpush.bf16.msra.mxu0 0
    %431 = vmatpush.bf16.msra.mxu0 0
    %432 = vmatpush.bf16.msra.mxu0 0
    %433 = vmatpush.bf16.msra.mxu0 %v421
    %434 = vmatpush.bf16.msra.mxu0 %v420
    %435 = vmatpush.bf16.msra.mxu0 %v419
    %436 = vmatpush.bf16.msra.mxu0 %v418
    %437 = vmatmul.bf16.gmra.mxu0 %v427
    %v438 = vpop.f32.mrf.mxu0
    %v439 = vadd.f32 %v400, %v438
    %v440 = vpop.f32.mrf.mxu0
    %441 = vdwg.mxu0
    %v442 = vtanh.pop %v439
    %v443 = vld [vmem:[#allocation8] sm:$0xf]
    %v444 = vld [vmem:[#allocation8 + $0x4] sm:$0xf]
    %v445 = vld [vmem:[#allocation8 + $0x8] sm:$0xf]
    %v446 = vld [vmem:[#allocation8 + $0xc] sm:$0xf]
    %v447 = vld [vmem:[#allocation8 + $0x10] sm:$0xf]
    %v448 = vld [vmem:[#allocation8 + $0x14] sm:$0xf]
    %v449 = vld [vmem:[#allocation8 + $0x18] sm:$0xf]
    %v450 = vld [vmem:[#allocation8 + $0x1c] sm:$0xf]
    %v451 = vld [vmem:[#allocation8 + $0x20] sm:$0xf]
    %v452 = vld [vmem:[#allocation8 + $0x24] sm:$0xf]
    %v453 = vld [vmem:[#allocation8 + $0x28] sm:$0xf]
    %v454 = vld [vmem:[#allocation8 + $0x2c] sm:$0xf]
    %v455 = vld [vmem:[#allocation8 + $0x30] sm:$0xf]
    %v456 = vld [vmem:[#allocation8 + $0x34] sm:$0xf]
    %v457 = vld [vmem:[#allocation8 + $0x38] sm:$0xf]
    %v458 = vld [vmem:[#allocation8 + $0x3c] sm:$0xf]
    %v459 = vpack.c.bf16 %v442, %v442
    %v460 = vld [vmem:[%s7] sm:$0x1]
    %v462 = vperm.slane %v460, 0
    %v480 = vunpack.c.l.b16 %v443
    %v481 = vunpack.c.l.b16 %v444
    %v482 = vunpack.c.l.b16 %v445
    %v483 = vunpack.c.l.b16 %v446
    %v484 = vunpack.c.l.b16 %v447
    %v485 = vunpack.c.l.b16 %v448
    %v486 = vunpack.c.l.b16 %v449
    %v487 = vunpack.c.l.b16 %v450
    %v488 = vunpack.c.l.b16 %v451
    %v489 = vunpack.c.l.b16 %v452
    %v490 = vunpack.c.l.b16 %v453
    %v491 = vunpack.c.l.b16 %v454
    %v492 = vunpack.c.l.b16 %v455
    %v493 = vunpack.c.l.b16 %v456
    %v494 = vunpack.c.l.b16 %v457
    %v495 = vunpack.c.l.b16 %v458
    %v496 = vpack.c.b16 %v481, %v480
    %v497 = vpack.c.b16 %v483, %v482
    %v498 = vpack.c.b16 %v485, %v484
    %v499 = vpack.c.b16 %v487, %v486
    %v500 = vpack.c.b16 %v489, %v488
    %v501 = vpack.c.b16 %v491, %v490
    %v502 = vpack.c.b16 %v493, %v492
    %v503 = vpack.c.b16 %v495, %v494
    %512 = vmatpush.bf16.msra.mxu0 %v503
    %513 = vmatpush.bf16.msra.mxu0 %v502
    %514 = vmatpush.bf16.msra.mxu0 %v501
    %515 = vmatpush.bf16.msra.mxu0 %v500
    %516 = vmatpush.bf16.msra.mxu0 %v499
    %517 = vmatpush.bf16.msra.mxu0 %v498
    %518 = vmatpush.bf16.msra.mxu0 %v497
    %519 = vmatpush.bf16.msra.mxu0 %v496
    %520 = vmatmul.bf16.gmra.mxu0 %v459
    %v521 = vpop.f32.mrf.mxu0
    %v522 = vadd.f32 %v462, %v521
    %v523 = vpop.f32.mrf.mxu0
    %524 = vdwg.mxu0
    %525 = vst [vmem:[#allocation10] sm:$0xff] %v522
    // Predicated region
    $region50: #{tpu_custom_call.1} parent=1 // pred_check
      _
    $region51: #{tpu_custom_call.1} parent=1 // pred_check_branch
      %527 = sbr.rel (0) target = $region53
    $region52: #{tpu_custom_call.1} parent=1 // pred_region
      %529 = vsyncadd [#allocation4], 0
      %s531 = sshll.u32 [#allocation10], 4
      %s532 = int_to_ptr.vmem [resolvable:$true] %s531
      %s533 = sshll.u32 %s8, 4
      %s534 = int_to_ptr.hbm [resolvable:$true] %s533
      %536 = dma.vmem_to_hbm [thread:$0]  %s532, 128, %s534, [#allocation4]
    $region53: #{tpu_custom_call.1} parent=1 // pred_fallthru
      _
    // Predicated region
    $region54: #{tpu_custom_call.1} parent=1 // pred_check
      _
    $region55: #{tpu_custom_call.1} parent=1 // pred_check_branch
      %538 = sbr.rel (0) target = $region57
    $region56: #{tpu_custom_call.1} parent=1 // pred_region
      %540 = vsyncadd [#allocation12], 0
      %s542 = sshll.u32 [#allocation11], 4
      %s543 = int_to_ptr.vmem [resolvable:$true] %s542
      %s544 = sshll.u32 %s9, 4
      %s545 = int_to_ptr.hbm [resolvable:$true] %s544
      %547 = dma.vmem_to_hbm [thread:$0]  %s543, 128, %s545, [#allocation12]
    $region57: #{tpu_custom_call.1} parent=1 // pred_fallthru
      _
    // Predicated region
    $region58: #{tpu_custom_call.1} parent=1 // pred_check
      _
    $region59: #{tpu_custom_call.1} parent=1 // pred_check_branch
      %549 = sbr.rel (0) target = $region61
    $region60: #{tpu_custom_call.1} parent=1 // pred_region
      %551 = dma.done [#allocation4], 128
    $region61: #{tpu_custom_call.1} parent=1 // pred_fallthru
      _
    // Predicated region
    $region62: #{tpu_custom_call.1} parent=1 // pred_check
      _
    $region63: #{tpu_custom_call.1} parent=1 // pred_check_branch
      %553 = sbr.rel (0) target = $region65
    $region64: #{tpu_custom_call.1} parent=1 // pred_region
      %555 = dma.done [#allocation12], 128
    $region65: #{tpu_custom_call.1} parent=1 // pred_fallthru
      _
    %556 = vsyncpa [#allocation3], 1
    %557 = vsyncpa [#allocation6], 1
    %558 = vsyncpa [#allocation9], 1
    %559 = vsyncpa [#allocation4], 1
    %560 = vsyncpa [#allocation12], 1

</llo_original>
